<compile_context>
chip_gen: v7x
topology: tpu7x:2x2x1
jax: 0.10.0
libtpu: 0.0.40
codegen_flags: <defaults>
</compile_context>

<pallas_src>
import functools

import jax
import jax.numpy as jnp
from jax.experimental import pallas as pl
from jax.experimental.pallas import tpu as pltpu


def _cdiv(a, b):
    return -(-a // b)


def _decoder_kernel(h_ref, v2_ref, w1_ref, w2_ref, out_ref):
    # Fused scalar + vector heads: two MXU pushes into one f32 accumulator,
    # one lane-merged store.  (MXU occupancy is irrelevant here - the kernel
    # is HBM-read bound - so we do not restructure the two dots.)
    acc = jnp.dot(h_ref[...], w1_ref[...], preferred_element_type=jnp.float32)
    acc = acc + jnp.dot(v2_ref[...], w2_ref[...], preferred_element_type=jnp.float32)
    out_ref[...] = acc.astype(out_ref.dtype)


def _vmem_budget_bytes():
    """Tile budget derived from physical VMEM; safe on v7x (64 MiB/TC)."""
    try:
        cap = pltpu.get_tpu_info().vmem_capacity_bytes
    except Exception:
        cap = 64 << 20  # assume the smallest generation (v7x) if query fails
    # ~1/4 of physical, clamped to [8 MiB, 24 MiB] (review: raise on 128 MiB
    # parts, never past what v7x tolerates together with the 32 MiB scoped cap).
    return int(max(8 << 20, min(24 << 20, cap // 4)))


def _pick_block_rows(n, d, p, in_itemsize, out_itemsize, w_bytes,
                     vmem_budget_bytes, target_bytes_per_step=2 << 20):
    """Row-tile size: >= ~2 MiB of activation reads per step, VMEM-bounded,
    megacore-friendly, rounded to the dtype's sublane-packing multiple."""
    row_multiple = 8 if in_itemsize >= 4 else (16 if in_itemsize == 2 else 32)
    if n <= row_multiple:
        return n

    row_in = 4 * d * in_itemsize            # h row (D) + v2 row (3D)
    row_out = p * out_itemsize

    # Bytes-per-step target (no hard cap; amortizes the ~0.35 us step overhead).
    tm = _cdiv(target_bytes_per_step, row_in)

    # VMEM ceiling: double-buffered h/v2 tiles + out slab + double-buffered
    # resident weight blocks.
    per_row_vmem = 2 * (row_in + row_out)
    avail = max(vmem_budget_bytes - 2 * w_bytes, per_row_vmem * row_multiple)
    tm = min(tm, avail // per_row_vmem)

    # Megacore: keep >= 4 grid steps (>= 2 per TensorCore on v7x) when N allows,
    # so the 'parallel' grid actually shards; harmless on single-TC parts.
    min_steps = 4
    if n >= min_steps * row_multiple:
        tm = min(tm, _cdiv(n, min_steps))

    tm = max(row_multiple, (tm // row_multiple) * row_multiple)
    return n if tm >= n else int(tm)


def pack_decoder_weights(Oh, Ov, compute_dtype=None):
    """Build the fused weight blocks ONCE at parameter-load time.

    Returns (w1, w2) with
      w1 = [Oh | 0]                : (D,  S + 3F)
      w2 = [0 | block-diag_3(Ov)]  : (3D, S + 3F),  w2[3d+i, S+3f+j] = Ov[d,f]*d_ij
    """
    d, s = Oh.shape
    f = Ov.shape[1]
    dt = compute_dtype if compute_dtype is not None else jnp.result_type(Oh.dtype, Ov.dtype)
    Oh = Oh.astype(dt)
    Ov = Ov.astype(dt)
    eye3 = jnp.eye(3, dtype=dt)
    wv = jnp.einsum("df,ij->difj", Ov, eye3).reshape(3 * d, 3 * f)
    w1 = jnp.concatenate([Oh, jnp.zeros((d, 3 * f), dtype=dt)], axis=1)
    w2 = jnp.concatenate([jnp.zeros((3 * d, s), dtype=dt), wv], axis=1)
    return w1, w2


def decoder_forward_packed(h, v, w1, w2, *, num_scalar_out, num_vector_out):
    """Decoder forward with pre-packed weights (the fast path)."""
    n, d = h.shape
    assert v.shape == (n, d, 3), v.shape
    s, f = num_scalar_out, num_vector_out
    p = s + 3 * f
    assert w1.shape == (d, p) and w2.shape == (3 * d, p), (w1.shape, w2.shape)
    out_dtype = jnp.result_type(h.dtype, w1.dtype)

    # Free view (row-major): v2[n, 3*dd + i] = v[n, dd, i].  No transpose.
    v2 = v.reshape(n, 3 * d)

    in_itemsize = jnp.dtype(h.dtype).itemsize
    w_itemsize = jnp.dtype(w1.dtype).itemsize
    out_itemsize = jnp.dtype(out_dtype).itemsize
    w_bytes = (w1.size + w2.size) * w_itemsize

    tm = _pick_block_rows(n, d, p, in_itemsize, out_itemsize, w_bytes,
                          _vmem_budget_bytes())
    grid = (_cdiv(n, tm),)

    cost = pl.CostEstimate(
        flops=2 * n * d * s + 2 * 3 * n * d * f,
        transcendentals=0,
        bytes_accessed=(h.size + v.size) * in_itemsize
        + w_bytes
        + n * p * out_itemsize,
    )

    out = pl.pallas_call(
        _decoder_kernel,
        out_shape=jax.ShapeDtypeStruct((n, p), out_dtype),
        grid=grid,
        in_specs=[
            pl.BlockSpec((tm, d), lambda i: (i, 0)),        # h row tile
            pl.BlockSpec((tm, 3 * d), lambda i: (i, 0)),    # v2 row tile (no transpose)
            pl.BlockSpec((d, p), lambda i: (0, 0)),         # w1, resident across grid
            pl.BlockSpec((3 * d, p), lambda i: (0, 0)),     # w2, resident across grid
        ],
        out_specs=pl.BlockSpec((tm, p), lambda i: (i, 0)),  # single lane-merged slab
        compiler_params=pltpu.CompilerParams(
            dimension_semantics=("parallel",),              # megacore sharding on v7x
            vmem_limit_bytes=32 * 1024 * 1024,
        ),
        cost_estimate=cost,
    )(h, v2, w1, w2)

    # Split inside the same jit so XLA fuses the slices (no extra passes).
    h_out = out[:, :s]
    v_out = out[:, s:].reshape(n, f, 3)                     # 'nfi' layout
    return h_out, jnp.squeeze(v_out)                        # matches torch .squeeze()


def decoder_forward(h, v, Oh, Ov):
    """Convenience wrapper: packs weights lazily *inside the consumer's jit*."""
    s = Oh.shape[1]
    f = Ov.shape[1]
    w1, w2 = pack_decoder_weights(Oh, Ov)
    return decoder_forward_packed(h, v, w1, w2,
                                  num_scalar_out=s, num_vector_out=f)


if __name__ == "__main__":
    # Shapes consistent with the module: N tokens, hidden dim,
    # num_scalar_out, num_vector_out (=1, as implied by the .squeeze()).
    DIM, S_OUT, V_OUT = 32, 4, 1

    key = jax.random.PRNGKey(0)
    k_h, k_v, k_oh, k_ov = jax.random.split(key, 4)

    # Deterministic "parameters" (module __init__ uses torch.randn of these shapes).
    Oh = jax.random.normal(k_oh, (DIM, S_OUT), dtype=jnp.float32)
    Ov = jax.random.normal(k_ov, (DIM, V_OUT), dtype=jnp.float32)

    # ---- f32 path (matches torch numerics), weights packed inside the jit ----
    N32 = 8
    h32 = jax.random.normal(k_h, (N32, DIM), dtype=jnp.float32)
    v32 = jax.random.normal(k_v, (N32, DIM, 3), dtype=jnp.float32)

    h_out, v_out = jax.jit(decoder_forward)(h32, v32, Oh, Ov)
    jax.block_until_ready((h_out, v_out))

    h_ref = h32 @ Oh
    v_ref = jnp.squeeze(jnp.einsum("ndi,df->nfi", v32, Ov))
    assert h_out.shape == (N32, S_OUT), h_out.shape
    assert v_out.shape == v_ref.shape == (N32, 3), v_out.shape
    assert jnp.allclose(h_out, h_ref, atol=1e-4, rtol=1e-4)
    assert jnp.allclose(v_out, v_ref, atol=1e-4, rtol=1e-4)

    # ---- bf16 path (halved HBM traffic), weights packed once at load time ----
    N16 = 64
    hb = jax.random.normal(k_h, (N16, DIM), dtype=jnp.float32).astype(jnp.bfloat16)
    vb = jax.random.normal(k_v, (N16, DIM, 3), dtype=jnp.float32).astype(jnp.bfloat16)
    w1b, w2b = jax.jit(functools.partial(pack_decoder_weights,
                                         compute_dtype=jnp.bfloat16))(Oh, Ov)

    fwd_packed = jax.jit(functools.partial(decoder_forward_packed,
                                           num_scalar_out=S_OUT,
                                           num_vector_out=V_OUT))
    h_out_b, v_out_b = fwd_packed(hb, vb, w1b, w2b)
    jax.block_until_ready((h_out_b, v_out_b))

    h_ref_b = hb.astype(jnp.float32) @ Oh.astype(jnp.bfloat16).astype(jnp.float32)
    v_ref_b = jnp.squeeze(jnp.einsum("ndi,df->nfi", vb.astype(jnp.float32),
                                     Ov.astype(jnp.bfloat16).astype(jnp.float32)))
    assert h_out_b.shape == (N16, S_OUT) and v_out_b.shape == (N16, 3)
    assert jnp.allclose(h_out_b.astype(jnp.float32), h_ref_b, atol=5e-2, rtol=5e-2)
    assert jnp.allclose(v_out_b.astype(jnp.float32), v_ref_b, atol=5e-2, rtol=5e-2)

    print("KERNEL_OK")
</pallas_src>

<mosaic_0001>
module attributes {stable_mosaic.version = 11 : i64} {
  func.func @_decoder_kernel(%arg0: i32, %arg1: memref<8x32xf32, #tpu.memory_space<vmem>>, %arg2: memref<8x96xf32, #tpu.memory_space<vmem>>, %arg3: memref<32x7xf32, #tpu.memory_space<vmem>>, %arg4: memref<96x7xf32, #tpu.memory_space<vmem>>, %arg5: memref<8x7xf32, #tpu.memory_space<vmem>>) attributes {dimension_semantics = [#tpu.dimension_semantics<parallel>], iteration_bounds = array<i64: 1>, scalar_prefetch = 0 : i64, scratch_operands = 0 : i64, tpu.core_type = #tpu.core_type<tc>, window_params = [{transform_indices = @transform_0, window_bounds = array<i64: 8, 32>}, {transform_indices = @transform_1, window_bounds = array<i64: 8, 96>}, {pipeline_mode = #tpu.pipeline_mode<synchronous>, transform_indices = @transform_2, window_bounds = array<i64: 32, 7>}, {pipeline_mode = #tpu.pipeline_mode<synchronous>, transform_indices = @transform_3, window_bounds = array<i64: 96, 7>}, {transform_indices = @transform_4, window_bounds = array<i64: 8, 7>}]} {
    %c0 = arith.constant 0 : index
    %c0_0 = arith.constant 0 : index
    %0 = vector.load %arg1[%c0, %c0_0] : memref<8x32xf32, #tpu.memory_space<vmem>>, vector<8x32xf32>
    %c0_1 = arith.constant 0 : index
    %c0_2 = arith.constant 0 : index
    %1 = vector.load %arg3[%c0_1, %c0_2] : memref<32x7xf32, #tpu.memory_space<vmem>>, vector<32x7xf32>
    %cst = arith.constant dense<0.000000e+00> : vector<8x7xf32>
    %2 = tpu.matmul %0, %1, %cst {dimension_numbers = #tpu.dot_dimension_numbers<[1], [0], [0], [1], [0, 0, 1, 1], [], []>} : vector<8x32xf32>, vector<32x7xf32>, vector<8x7xf32> -> vector<8x7xf32>
    %c0_3 = arith.constant 0 : index
    %c0_4 = arith.constant 0 : index
    %3 = vector.load %arg2[%c0_3, %c0_4] : memref<8x96xf32, #tpu.memory_space<vmem>>, vector<8x96xf32>
    %c0_5 = arith.constant 0 : index
    %c0_6 = arith.constant 0 : index
    %4 = vector.load %arg4[%c0_5, %c0_6] : memref<96x7xf32, #tpu.memory_space<vmem>>, vector<96x7xf32>
    %cst_7 = arith.constant dense<0.000000e+00> : vector<8x7xf32>
    %5 = tpu.matmul %3, %4, %cst_7 {dimension_numbers = #tpu.dot_dimension_numbers<[1], [0], [0], [1], [0, 0, 1, 1], [], []>} : vector<8x96xf32>, vector<96x7xf32>, vector<8x7xf32> -> vector<8x7xf32>
    %6 = arith.addf %2, %5 : vector<8x7xf32>
    %c0_8 = arith.constant 0 : index
    %c0_9 = arith.constant 0 : index
    %7 = vector.load %arg5[%c0_8, %c0_9] : memref<8x7xf32, #tpu.memory_space<vmem>>, vector<8x7xf32>
    tpu.vector_store %arg5[%c0_8, %c0_9], %6 {strides = array<i32>} : memref<8x7xf32, #tpu.memory_space<vmem>>, vector<8x7xf32>,
    return
  }
  func.func @transform_0(%arg0: i32) -> (i32, i32) {
    %c0_i32 = arith.constant 0 : i32
    %c0_i32_0 = arith.constant 0 : i32
    return %arg0, %c0_i32 : i32, i32
  }
  func.func @transform_1(%arg0: i32) -> (i32, i32) {
    %c0_i32 = arith.constant 0 : i32
    %c0_i32_0 = arith.constant 0 : i32
    return %arg0, %c0_i32 : i32, i32
  }
  func.func @transform_2(%arg0: i32) -> (i32, i32) {
    %c0_i32 = arith.constant 0 : i32
    %c0_i32_0 = arith.constant 0 : i32
    %c0_i32_1 = arith.constant 0 : i32
    return %c0_i32, %c0_i32_0 : i32, i32
  }
  func.func @transform_3(%arg0: i32) -> (i32, i32) {
    %c0_i32 = arith.constant 0 : i32
    %c0_i32_0 = arith.constant 0 : i32
    %c0_i32_1 = arith.constant 0 : i32
    return %c0_i32, %c0_i32_0 : i32, i32
  }
  func.func @transform_4(%arg0: i32) -> (i32, i32) {
    %c0_i32 = arith.constant 0 : i32
    %c0_i32_0 = arith.constant 0 : i32
    return %arg0, %c0_i32 : i32, i32
  }
}

</mosaic_0001>

<llo_original>
// kernel: decoder_forward.1
$region0: #{decoder_forward.1}
  #allocation0 [shape = 'u32[]', space=smem, size = 0x4, offset = 0x4, fixed_abs, tag = 'smem constant byte address 0x4 - core index']
  #allocation1 [shape = 'u32[144,128]{1,0:T(1,128)}', space=vmem, size = 0x12000, scoped, tag = 'internal scratch']
  %s0 = inlined_call_operand.vmem [shape: f32[8,32], index: 0, kind: input, shape index: {}]
  %s1 = inlined_call_operand.vmem [shape: f32[8,96], index: 1, kind: input, shape index: {}]
  %s2 = inlined_call_operand.vmem [shape: f32[32,7], index: 2, kind: input, shape index: {}]
  %s3 = inlined_call_operand.vmem [shape: f32[96,7], index: 3, kind: input, shape index: {}]
  %s4 = inlined_call_operand.vmem [shape: f32[8,7], index: 4, kind: output, shape index: {}]
  %s5 = sld [smem:[#allocation0]]
  $region26: #{decoder_forward.1} parent=0
    _
  %s7 = ssub.s32 1, %s5
  %s8 = scalar_select 0, %s7, %s5
  // Predicated region
  $region2: #{decoder_forward.1} parent=0 // pred_check
    _
  $region3: #{decoder_forward.1} parent=0 // pred_check_branch
    %10 = sbr.rel (0) target = $region5
  $region4: #{decoder_forward.1} parent=0 // pred_region
    _
  $region5: #{decoder_forward.1} parent=0 // pred_fallthru
    _
  // Predicated region
  $region6: #{decoder_forward.1} parent=0 // pred_check
    _
  $region7: #{decoder_forward.1} parent=0 // pred_check_branch
    %12 = sbr.rel (0) target = $region9
  $region8: #{decoder_forward.1} parent=0 // pred_region
    _
  $region9: #{decoder_forward.1} parent=0 // pred_fallthru
    _
  // Predicated region
  $region10: #{decoder_forward.1} parent=0 // pred_check
    _
  $region11: #{decoder_forward.1} parent=0 // pred_check_branch
    %14 = sbr.rel (0) target = $region13
  $region12: #{decoder_forward.1} parent=0 // pred_region
    _
  $region13: #{decoder_forward.1} parent=0 // pred_fallthru
    _
  // Predicated region
  $region14: #{decoder_forward.1} parent=0 // pred_check
    _
  $region15: #{decoder_forward.1} parent=0 // pred_check_branch
    %16 = sbr.rel (0) target = $region17
  $region16: #{decoder_forward.1} parent=0 // pred_region
    _
  $region17: #{decoder_forward.1} parent=0 // pred_fallthru
    _
  %v17 = vld [vmem:[%s0] sm:$0xff]
  %v18 = vld [vmem:[%s2] sm:$0xff]
  %v19 = vld [vmem:[%s2 + $0x8] sm:$0xff]
  %v20 = vld [vmem:[%s2 + $0x10] sm:$0xff]
  %v21 = vld [vmem:[%s2 + $0x18] sm:$0xff]
  %v22 = vld [vmem:[%s1] sm:$0xff]
  %v23 = vld [vmem:[%s3] sm:$0xff]
  %v24 = vld [vmem:[%s3 + $0x8] sm:$0xff]
  %v25 = vld [vmem:[%s3 + $0x10] sm:$0xff]
  %v26 = vld [vmem:[%s3 + $0x18] sm:$0xff]
  %v27 = vld [vmem:[%s3 + $0x20] sm:$0xff]
  %v28 = vld [vmem:[%s3 + $0x28] sm:$0xff]
  %v29 = vld [vmem:[%s3 + $0x30] sm:$0xff]
  %v30 = vld [vmem:[%s3 + $0x38] sm:$0xff]
  %v31 = vld [vmem:[%s3 + $0x40] sm:$0xff]
  %v32 = vld [vmem:[%s3 + $0x48] sm:$0xff]
  %v33 = vld [vmem:[%s3 + $0x50] sm:$0xff]
  %v34 = vld [vmem:[%s3 + $0x58] sm:$0xff]
  %vm35 = vcmask 785408
  %v37 = vsel %vm35, %v22, 0
  %39 = vmatprep.subr.mxu0 0.0
  %40 = vmatpush1.msra.mxu0 %v23
  %41 = vmatprep.subr.mxu0 0.0
  %42 = vmatpush1.msra.mxu0 %v24
  %43 = vmatprep.subr.mxu0 0.0
  %44 = vmatpush1.msra.mxu0 %v25
  %45 = vmatprep.subr.mxu0 0.0
  %46 = vmatpush1.msra.mxu0 %v26
  %47 = vmatprep.subr.mxu0 0.0
  %48 = vmatpush1.msra.mxu0 %v27
  %49 = vmatprep.subr.mxu0 0.0
  %50 = vmatpush1.msra.mxu0 %v28
  %51 = vmatprep.subr.mxu0 0.0
  %52 = vmatpush1.msra.mxu0 %v29
  %53 = vmatprep.subr.mxu0 0.0
  %54 = vmatpush1.msra.mxu0 %v30
  %55 = vmatprep.subr.mxu0 0.0
  %56 = vmatpush1.msra.mxu0 %v31
  %57 = vmatprep.subr.mxu0 0.0
  %58 = vmatpush1.msra.mxu0 %v32
  %59 = vmatprep.subr.mxu0 0.0
  %60 = vmatpush1.msra.mxu0 %v33
  %61 = vmatprep.subr.mxu0 0.0
  %62 = vmatpush1.msra.mxu0 %v34
  %63 = vmatprep.subr.mxu0 0.0
  %64 = vmatpush1.msra.mxu0 0.0
  %65 = vmatprep.subr.mxu0 0.0
  %66 = vmatpush1.msra.mxu0 0.0
  %67 = vmatprep.subr.mxu0 0.0
  %68 = vmatpush1.msra.mxu0 0.0
  %69 = vmatprep.subr.mxu0 0.0
  %70 = vmatpush1.msra.mxu0 0.0
  %71 = vmatprep.subr.mxu0 0.0
  %72 = vmatpush1.msra.mxu0 0.0
  %73 = vmatprep.subr.mxu0 0.0
  %74 = vmatpush1.msra.mxu0 0.0
  %75 = vmatprep.subr.mxu0 0.0
  %76 = vmatpush1.msra.mxu0 0.0
  %77 = vmatprep.subr.mxu0 0.0
  %78 = vmatpush1.msra.mxu0 0.0
  %79 = vmatprep.subr.mxu0 0.0
  %80 = vmatpush1.msra.mxu0 0.0
  %81 = vmatprep.subr.mxu0 0.0
  %82 = vmatpush1.msra.mxu0 0.0
  %83 = vmatprep.subr.mxu0 0.0
  %84 = vmatpush1.msra.mxu0 0.0
  %85 = vmatprep.subr.mxu0 0.0
  %86 = vmatpush1.msra.mxu0 0.0
  %87 = vmatprep.subr.mxu0 0.0
  %88 = vmatpush1.msra.mxu0 0.0
  %89 = vmatprep.subr.mxu0 0.0
  %90 = vmatpush1.msra.mxu0 0.0
  %91 = vmatprep.subr.mxu0 0.0
  %92 = vmatpush1.msra.mxu0 0.0
  %93 = vmatprep.subr.mxu0 0.0
  %94 = vmatpush1.msra.mxu0 0.0
  %95 = vmatprep.subr.mxu0 0.0
  %96 = vmatpush1.msra.mxu0 0.0
  %97 = vmatprep.subr.mxu0 0.0
  %98 = vmatpush1.msra.mxu0 0.0
  %99 = vmatprep.subr.mxu0 0.0
  %100 = vmatpush1.msra.mxu0 0.0
  %101 = vmatprep.subr.mxu0 0.0
  %102 = vmatpush1.msra.mxu0 0.0
  %103 = vmatprep.mubr.f32.mxu0 0.0
  %104 = vmatmul.mubr.f32.gmra.mrb[0].mxu0 %v37
  %v105 = vpop.f32.mrb[0].mxu0
  %v106 = vadd.f32 0.0, %v105
  %v107 = vpop.f32.mrb[0].mxu0
  %108 = vdwg.mxu0
  %vm109 = vcmask 261120
  %v111 = vsel %vm109, %v17, 0
  %113 = vmatprep.subr.mxu0 0.0
  %114 = vmatpush1.msra.mxu0 %v18
  %115 = vmatprep.subr.mxu0 0.0
  %116 = vmatpush1.msra.mxu0 %v19
  %117 = vmatprep.subr.mxu0 0.0
  %118 = vmatpush1.msra.mxu0 %v20
  %119 = vmatprep.subr.mxu0 0.0
  %120 = vmatpush1.msra.mxu0 %v21
  %121 = vmatprep.subr.mxu0 0.0
  %122 = vmatpush1.msra.mxu0 0.0
  %123 = vmatprep.subr.mxu0 0.0
  %124 = vmatpush1.msra.mxu0 0.0
  %125 = vmatprep.subr.mxu0 0.0
  %126 = vmatpush1.msra.mxu0 0.0
  %127 = vmatprep.subr.mxu0 0.0
  %128 = vmatpush1.msra.mxu0 0.0
  %129 = vmatprep.subr.mxu0 0.0
  %130 = vmatpush1.msra.mxu0 0.0
  %131 = vmatprep.subr.mxu0 0.0
  %132 = vmatpush1.msra.mxu0 0.0
  %133 = vmatprep.subr.mxu0 0.0
  %134 = vmatpush1.msra.mxu0 0.0
  %135 = vmatprep.subr.mxu0 0.0
  %136 = vmatpush1.msra.mxu0 0.0
  %137 = vmatprep.subr.mxu0 0.0
  %138 = vmatpush1.msra.mxu0 0.0
  %139 = vmatprep.subr.mxu0 0.0
  %140 = vmatpush1.msra.mxu0 0.0
  %141 = vmatprep.subr.mxu0 0.0
  %142 = vmatpush1.msra.mxu0 0.0
  %143 = vmatprep.subr.mxu0 0.0
  %144 = vmatpush1.msra.mxu0 0.0
  %145 = vmatprep.subr.mxu0 0.0
  %146 = vmatpush1.msra.mxu0 0.0
  %147 = vmatprep.subr.mxu0 0.0
  %148 = vmatpush1.msra.mxu0 0.0
  %149 = vmatprep.subr.mxu0 0.0
  %150 = vmatpush1.msra.mxu0 0.0
  %151 = vmatprep.subr.mxu0 0.0
  %152 = vmatpush1.msra.mxu0 0.0
  %153 = vmatprep.subr.mxu0 0.0
  %154 = vmatpush1.msra.mxu0 0.0
  %155 = vmatprep.subr.mxu0 0.0
  %156 = vmatpush1.msra.mxu0 0.0
  %157 = vmatprep.subr.mxu0 0.0
  %158 = vmatpush1.msra.mxu0 0.0
  %159 = vmatprep.subr.mxu0 0.0
  %160 = vmatpush1.msra.mxu0 0.0
  %161 = vmatprep.subr.mxu0 0.0
  %162 = vmatpush1.msra.mxu0 0.0
  %163 = vmatprep.subr.mxu0 0.0
  %164 = vmatpush1.msra.mxu0 0.0
  %165 = vmatprep.subr.mxu0 0.0
  %166 = vmatpush1.msra.mxu0 0.0
  %167 = vmatprep.subr.mxu0 0.0
  %168 = vmatpush1.msra.mxu0 0.0
  %169 = vmatprep.subr.mxu0 0.0
  %170 = vmatpush1.msra.mxu0 0.0
  %171 = vmatprep.subr.mxu0 0.0
  %172 = vmatpush1.msra.mxu0 0.0
  %173 = vmatprep.subr.mxu0 0.0
  %174 = vmatpush1.msra.mxu0 0.0
  %175 = vmatprep.subr.mxu0 0.0
  %176 = vmatpush1.msra.mxu0 0.0
  %177 = vmatprep.mubr.f32.mxu0 0.0
  %178 = vmatmul.mubr.f32.gmra.mrb[0].mxu0 %v111
  %v179 = vpop.f32.mrb[0].mxu0
  %v180 = vadd.f32 %v106, %v179
  %v181 = vpop.f32.mrb[0].mxu0
  %182 = vdwg.mxu0
  %vm183 = vcmask 56320
  %184 = vst.msk [vmem:[%s4] sm:$0xff] %vm183, %v180
  // Predicated region
  $region18: #{decoder_forward.1} parent=0 // pred_check
    _
  $region19: #{decoder_forward.1} parent=0 // pred_check_branch
    %186 = sbr.rel (0) target = $region21
  $region20: #{decoder_forward.1} parent=0 // pred_region
    _
  $region21: #{decoder_forward.1} parent=0 // pred_fallthru
    _
  // Predicated region
  $region22: #{decoder_forward.1} parent=0 // pred_check
    _
  $region23: #{decoder_forward.1} parent=0 // pred_check_branch
    %188 = sbr.rel (0) target = $region25
  $region24: #{decoder_forward.1} parent=0 // pred_region
    _
  $region25: #{decoder_forward.1} parent=0 // pred_fallthru
    _

</llo_original>
